<compile_context>
chip_gen: v5e
topology: v5e:2x2
jax: 0.10.0
libtpu: 0.0.40
codegen_flags: <defaults>
</compile_context>

<pallas_src>
import functools

import jax
import jax.numpy as jnp
from jax.experimental import pallas as pl
from jax.experimental.pallas import tpu as pltpu

_PADF = 16      # padded feature dim of the parameter slab (>= max layer width 10)
_BIAS_COL = 15  # bias lives in the last slab column (never collides with W^T cols)


def _mlp_kernel(layer_dims, x_ref, slab_ref, o_ref):
    """x_ref: (f_in0, TB) batch-on-lanes; slab_ref: (n_layers, 16, 16); o_ref: (f_out_last, TB)."""
    n_layers = len(layer_dims)
    h = x_ref[...].astype(jnp.float32)               # mirrors x.float()
    for i, (f_in, f_out) in enumerate(layer_dims):
        layer = slab_ref[i]                          # (16, 16) f32, one tiny VMEM read
        # y = W @ h + b via unrolled VPU broadcast-FMA:
        #   y[j, :] = sum_k W[j, k] * h[k, :] + b[j]
        y = layer[:f_out, 0:1] * h[0:1, :]           # (f_out,1)*(1,TB) -> (f_out,TB)
        for k in range(1, f_in):
            y = y + layer[:f_out, k:k + 1] * h[k:k + 1, :]
        y = y + layer[:f_out, _BIAS_COL:_BIAS_COL + 1]
        if i < n_layers - 1:                         # Tanh after hidden layers only
            y = jnp.tanh(y)                          # EUP slot
        h = y
    o_ref[...] = h.astype(o_ref.dtype)


def pack_params(params):
    """Pack [(W(in,out), b(out,)), ...] into one (n_layers, 16, 16) f32 slab."""
    n_layers = len(params)
    slab = jnp.zeros((n_layers, _PADF, _PADF), jnp.float32)
    for i, (W, b) in enumerate(params):
        f_in, f_out = W.shape
        slab = slab.at[i, :f_out, :f_in].set(W.T)          # store as (out, in)
        slab = slab.at[i, :f_out, _BIAS_COL].set(b.reshape(-1))
    return slab


def mlp_forward(x, params, *, tile_n=512):
    """x: (N, 1). params: list of (W (in,out), b (out,)). Returns (N, 1) float32."""
    layer_dims = tuple((W.shape[0], W.shape[1]) for W, _ in params)
    in_dim = layer_dims[0][0]
    out_dim = layer_dims[-1][1]
    N = x.shape[0]

    # Lane-dense layout: batch along lanes, padded to a multiple of the tile.
    xt = x.astype(jnp.float32).reshape(N, in_dim).T        # (in_dim, N)
    n128 = ((N + 127) // 128) * 128
    tb = min(tile_n, n128)                                 # tile_n multiple of 128
    n_total = ((n128 + tb - 1) // tb) * tb
    if n_total != N:
        xt = jnp.pad(xt, ((0, 0), (0, n_total - N)))

    slab = pack_params(params)
    grid = (n_total // tb,)

    out = pl.pallas_call(
        functools.partial(_mlp_kernel, layer_dims),
        grid=grid,
        in_specs=[
            pl.BlockSpec((in_dim, tb), lambda i: (0, i)),        # batch tiles on lanes
            pl.BlockSpec(slab.shape, lambda i: (0, 0, 0)),       # params: resident, one DMA
        ],
        out_specs=pl.BlockSpec((out_dim, tb), lambda i: (0, i)),  # lane-dense unmasked store
        out_shape=jax.ShapeDtypeStruct((out_dim, n_total), jnp.float32),
        compiler_params=pltpu.CompilerParams(
            dimension_semantics=("parallel",)),                  # shard batch tiles across TCs
    )(xt, slab)

    return out[:, :N].T                                          # back to (N, out_dim)


def init_mlp_params(key, num_hidden=1):
    """Deterministic init mirroring torch.nn.Linear (stored as W (in,out), b (out,))."""
    dims = [1] + [10] * int(num_hidden) + [1]
    params = []
    for i in range(len(dims) - 1):
        fan_in, fan_out = dims[i], dims[i + 1]
        key, kw, kb = jax.random.split(key, 3)
        bound = 1.0 / (fan_in ** 0.5)
        W = jax.random.uniform(kw, (fan_in, fan_out), jnp.float32, -bound, bound)
        b = jax.random.uniform(kb, (fan_out,), jnp.float32, -bound, bound)
        params.append((W, b))
    return params


def mlp_reference(x, params):
    h = x.astype(jnp.float32)
    n = len(params)
    for i, (W, b) in enumerate(params):
        h = jnp.dot(h, W, precision=jax.lax.Precision.HIGHEST) + b
        if i < n - 1:
            h = jnp.tanh(h)
    return h


if __name__ == "__main__":
    key = jax.random.PRNGKey(0)
    # (num_hidden, batch): exercises the K=1 first layer, 10x10 hidden layers,
    # lane padding (200 -> 256), and the multi-tile "parallel" grid (1200 -> 3 tiles).
    for num_hidden, batch in ((1, 8), (2, 200), (2, 1200)):
        key, kx, kp = jax.random.split(key, 3)
        x = jax.random.normal(kx, (batch, 1), jnp.float32)
        params = init_mlp_params(kp, num_hidden=num_hidden)

        out = jax.block_until_ready(mlp_forward(x, params))
        ref = mlp_reference(x, params)

        assert out.shape == (batch, 1)
        assert jnp.allclose(out, ref, atol=1e-5, rtol=1e-5), float(
            jnp.max(jnp.abs(out - ref)))

    print("KERNEL_OK")
</pallas_src>

<mosaic_0001>
module attributes {stable_mosaic.version = 11 : i64} {
  func.func @_mlp_kernel(%arg0: i32, %arg1: memref<1x128xf32, #tpu.memory_space<vmem>>, %arg2: memref<2x16x16xf32, #tpu.memory_space<vmem>>, %arg3: memref<1x128xf32, #tpu.memory_space<vmem>>) attributes {dimension_semantics = [#tpu.dimension_semantics<parallel>], iteration_bounds = array<i64: 1>, scalar_prefetch = 0 : i64, scratch_operands = 0 : i64, tpu.core_type = #tpu.core_type<tc>, window_params = [{transform_indices = @transform_0, window_bounds = array<i64: 1, 128>}, {pipeline_mode = #tpu.pipeline_mode<synchronous>, transform_indices = @transform_1, window_bounds = array<i64: 2, 16, 16>}, {transform_indices = @transform_2, window_bounds = array<i64: 1, 128>}]} {
    %c0 = arith.constant 0 : index
    %c0_0 = arith.constant 0 : index
    %0 = vector.load %arg1[%c0, %c0_0] : memref<1x128xf32, #tpu.memory_space<vmem>>, vector<1x128xf32>
    %c0_1 = arith.constant 0 : index
    %c0_2 = arith.constant 0 : index
    %c0_3 = arith.constant 0 : index
    %1 = vector.load %arg2[%c0_1, %c0_2, %c0_3] : memref<2x16x16xf32, #tpu.memory_space<vmem>>, vector<1x16x16xf32>
    %2 = vector.shape_cast %1 : vector<1x16x16xf32> to vector<16x16xf32>
    %3 = vector.extract_strided_slice %2 {offsets = [0, 0], sizes = [10, 1], strides = [1, 1]} : vector<16x16xf32> to vector<10x1xf32>
    %4 = vector.broadcast %3 : vector<10x1xf32> to vector<10x128xf32>
    %5 = vector.broadcast %0 : vector<1x128xf32> to vector<10x128xf32>
    %6 = arith.mulf %4, %5 : vector<10x128xf32>
    %7 = vector.extract_strided_slice %2 {offsets = [0, 15], sizes = [10, 1], strides = [1, 1]} : vector<16x16xf32> to vector<10x1xf32>
    %8 = vector.broadcast %7 : vector<10x1xf32> to vector<10x128xf32>
    %9 = arith.addf %6, %8 : vector<10x128xf32>
    %10 = math.tanh %9 : vector<10x128xf32>
    %c1 = arith.constant 1 : index
    %c0_4 = arith.constant 0 : index
    %c0_5 = arith.constant 0 : index
    %11 = vector.load %arg2[%c1, %c0_4, %c0_5] : memref<2x16x16xf32, #tpu.memory_space<vmem>>, vector<1x16x16xf32>
    %12 = vector.shape_cast %11 : vector<1x16x16xf32> to vector<16x16xf32>
    %13 = vector.extract_strided_slice %12 {offsets = [0, 0], sizes = [1, 1], strides = [1, 1]} : vector<16x16xf32> to vector<1x1xf32>
    %14 = vector.extract_strided_slice %10 {offsets = [0, 0], sizes = [1, 128], strides = [1, 1]} : vector<10x128xf32> to vector<1x128xf32>
    %15 = vector.broadcast %13 : vector<1x1xf32> to vector<1x128xf32>
    %16 = arith.mulf %15, %14 : vector<1x128xf32>
    %17 = vector.extract_strided_slice %12 {offsets = [0, 1], sizes = [1, 1], strides = [1, 1]} : vector<16x16xf32> to vector<1x1xf32>
    %18 = vector.extract_strided_slice %10 {offsets = [1, 0], sizes = [1, 128], strides = [1, 1]} : vector<10x128xf32> to vector<1x128xf32>
    %19 = vector.broadcast %17 : vector<1x1xf32> to vector<1x128xf32>
    %20 = arith.mulf %19, %18 : vector<1x128xf32>
    %21 = arith.addf %16, %20 : vector<1x128xf32>
    %22 = vector.extract_strided_slice %12 {offsets = [0, 2], sizes = [1, 1], strides = [1, 1]} : vector<16x16xf32> to vector<1x1xf32>
    %23 = vector.extract_strided_slice %10 {offsets = [2, 0], sizes = [1, 128], strides = [1, 1]} : vector<10x128xf32> to vector<1x128xf32>
    %24 = vector.broadcast %22 : vector<1x1xf32> to vector<1x128xf32>
    %25 = arith.mulf %24, %23 : vector<1x128xf32>
    %26 = arith.addf %21, %25 : vector<1x128xf32>
    %27 = vector.extract_strided_slice %12 {offsets = [0, 3], sizes = [1, 1], strides = [1, 1]} : vector<16x16xf32> to vector<1x1xf32>
    %28 = vector.extract_strided_slice %10 {offsets = [3, 0], sizes = [1, 128], strides = [1, 1]} : vector<10x128xf32> to vector<1x128xf32>
    %29 = vector.broadcast %27 : vector<1x1xf32> to vector<1x128xf32>
    %30 = arith.mulf %29, %28 : vector<1x128xf32>
    %31 = arith.addf %26, %30 : vector<1x128xf32>
    %32 = vector.extract_strided_slice %12 {offsets = [0, 4], sizes = [1, 1], strides = [1, 1]} : vector<16x16xf32> to vector<1x1xf32>
    %33 = vector.extract_strided_slice %10 {offsets = [4, 0], sizes = [1, 128], strides = [1, 1]} : vector<10x128xf32> to vector<1x128xf32>
    %34 = vector.broadcast %32 : vector<1x1xf32> to vector<1x128xf32>
    %35 = arith.mulf %34, %33 : vector<1x128xf32>
    %36 = arith.addf %31, %35 : vector<1x128xf32>
    %37 = vector.extract_strided_slice %12 {offsets = [0, 5], sizes = [1, 1], strides = [1, 1]} : vector<16x16xf32> to vector<1x1xf32>
    %38 = vector.extract_strided_slice %10 {offsets = [5, 0], sizes = [1, 128], strides = [1, 1]} : vector<10x128xf32> to vector<1x128xf32>
    %39 = vector.broadcast %37 : vector<1x1xf32> to vector<1x128xf32>
    %40 = arith.mulf %39, %38 : vector<1x128xf32>
    %41 = arith.addf %36, %40 : vector<1x128xf32>
    %42 = vector.extract_strided_slice %12 {offsets = [0, 6], sizes = [1, 1], strides = [1, 1]} : vector<16x16xf32> to vector<1x1xf32>
    %43 = vector.extract_strided_slice %10 {offsets = [6, 0], sizes = [1, 128], strides = [1, 1]} : vector<10x128xf32> to vector<1x128xf32>
    %44 = vector.broadcast %42 : vector<1x1xf32> to vector<1x128xf32>
    %45 = arith.mulf %44, %43 : vector<1x128xf32>
    %46 = arith.addf %41, %45 : vector<1x128xf32>
    %47 = vector.extract_strided_slice %12 {offsets = [0, 7], sizes = [1, 1], strides = [1, 1]} : vector<16x16xf32> to vector<1x1xf32>
    %48 = vector.extract_strided_slice %10 {offsets = [7, 0], sizes = [1, 128], strides = [1, 1]} : vector<10x128xf32> to vector<1x128xf32>
    %49 = vector.broadcast %47 : vector<1x1xf32> to vector<1x128xf32>
    %50 = arith.mulf %49, %48 : vector<1x128xf32>
    %51 = arith.addf %46, %50 : vector<1x128xf32>
    %52 = vector.extract_strided_slice %12 {offsets = [0, 8], sizes = [1, 1], strides = [1, 1]} : vector<16x16xf32> to vector<1x1xf32>
    %53 = vector.extract_strided_slice %10 {offsets = [8, 0], sizes = [1, 128], strides = [1, 1]} : vector<10x128xf32> to vector<1x128xf32>
    %54 = vector.broadcast %52 : vector<1x1xf32> to vector<1x128xf32>
    %55 = arith.mulf %54, %53 : vector<1x128xf32>
    %56 = arith.addf %51, %55 : vector<1x128xf32>
    %57 = vector.extract_strided_slice %12 {offsets = [0, 9], sizes = [1, 1], strides = [1, 1]} : vector<16x16xf32> to vector<1x1xf32>
    %58 = vector.extract_strided_slice %10 {offsets = [9, 0], sizes = [1, 128], strides = [1, 1]} : vector<10x128xf32> to vector<1x128xf32>
    %59 = vector.broadcast %57 : vector<1x1xf32> to vector<1x128xf32>
    %60 = arith.mulf %59, %58 : vector<1x128xf32>
    %61 = arith.addf %56, %60 : vector<1x128xf32>
    %62 = vector.extract_strided_slice %12 {offsets = [0, 15], sizes = [1, 1], strides = [1, 1]} : vector<16x16xf32> to vector<1x1xf32>
    %63 = vector.broadcast %62 : vector<1x1xf32> to vector<1x128xf32>
    %64 = arith.addf %61, %63 : vector<1x128xf32>
    %c0_6 = arith.constant 0 : index
    %c0_7 = arith.constant 0 : index
    %65 = vector.load %arg3[%c0_6, %c0_7] : memref<1x128xf32, #tpu.memory_space<vmem>>, vector<1x128xf32>
    tpu.vector_store %arg3[%c0_6, %c0_7], %64 {strides = array<i32>} : memref<1x128xf32, #tpu.memory_space<vmem>>, vector<1x128xf32>,
    return
  }
  func.func @transform_0(%arg0: i32) -> (i32, i32) {
    %c0_i32 = arith.constant 0 : i32
    %c0_i32_0 = arith.constant 0 : i32
    return %c0_i32, %arg0 : i32, i32
  }
  func.func @transform_1(%arg0: i32) -> (i32, i32, i32) {
    %c0_i32 = arith.constant 0 : i32
    %c0_i32_0 = arith.constant 0 : i32
    %c0_i32_1 = arith.constant 0 : i32
    %c0_i32_2 = arith.constant 0 : i32
    return %c0_i32, %c0_i32_0, %c0_i32_1 : i32, i32, i32
  }
  func.func @transform_2(%arg0: i32) -> (i32, i32) {
    %c0_i32 = arith.constant 0 : i32
    %c0_i32_0 = arith.constant 0 : i32
    return %c0_i32, %arg0 : i32, i32
  }
}

</mosaic_0001>

<llo_original>
// kernel: tpu_custom_call.1
$region0: #{tpu_custom_call.1}
  #allocation0 [shape = 'u32[]', space=smem, size = 0x4, offset = 0x4, fixed_abs, tag = 'smem constant byte address 0x4 - core index']
  #allocation1 [shape = 'u32[72,128]{1,0:T(1,128)}', space=vmem, size = 0x9000, scoped, tag = 'internal scratch']
  %s0 = inlined_call_operand.hbm [shape: f32[1,128], index: 0, kind: input, shape index: {}]
  %s1 = inlined_call_operand.hbm [shape: f32[2,16,16], index: 1, kind: input, shape index: {}]
  %s2 = inlined_call_operand.hbm [shape: f32[1,128], index: 2, kind: output, shape index: {}]
  %s3 = sld [smem:[#allocation0]]
  $region26: #{tpu_custom_call.1} parent=0
    _
  %s5 = ssub.s32 1, %s3
  %s6 = scalar_select 0, %s5, %s3
  $region1: #{tpu_custom_call.1} parent=0
    #allocation2 [shape = 'u8[512]{0}', space=vmem, size = 0x400, scoped, tag = 'input window, operand 0, single buffered']
    #allocation3 [shape = 's32[1]{0}', space=sflag, size = 0x4, scoped, tag = 'scoped memory for tpu_custom_call.1']
    #allocation4 [shape = 's32[1]{0}', space=sflag, size = 0x4, scoped, tag = 'scoped memory for tpu_custom_call.1']
    #allocation5 [shape = 'u8[16384]{0}', space=vmem, size = 0x4000, scoped, tag = 'input window, operand 1, single buffered']
    #allocation6 [shape = 's32[1]{0}', space=sflag, size = 0x4, scoped, tag = 'scoped memory for tpu_custom_call.1']
    #allocation7 [shape = 'u8[512]{0}', space=vmem, size = 0x400, scoped, tag = 'output window, operand 0, single buffered']
    %7 = vsyncpa [#allocation3], 0
    %8 = vsyncpa [#allocation6], 0
    %9 = vsyncpa [#allocation4], 0
    // Predicated region
    $region2: #{tpu_custom_call.1} parent=1 // pred_check
      _
    $region3: #{tpu_custom_call.1} parent=1 // pred_check_branch
      %11 = sbr.rel (0) target = $region5
    $region4: #{tpu_custom_call.1} parent=1 // pred_region
      %13 = vsyncadd [#allocation3], 0
      %s15 = sshll.u32 %s0, 4
      %s16 = int_to_ptr.hbm [resolvable:$true] %s15
      %s17 = sshll.u32 [#allocation2], 4
      %s18 = int_to_ptr.vmem [resolvable:$true] %s17
      %20 = dma.hbm_to_vmem [thread:$0]  %s16, 16, %s18, [#allocation3]
    $region5: #{tpu_custom_call.1} parent=1 // pred_fallthru
      _
    // Predicated region
    $region6: #{tpu_custom_call.1} parent=1 // pred_check
      _
    $region7: #{tpu_custom_call.1} parent=1 // pred_check_branch
      %22 = sbr.rel (0) target = $region9
    $region8: #{tpu_custom_call.1} parent=1 // pred_region
      %24 = vsyncadd [#allocation6], 0
      %s25 = sshll.u32 %s1, 4
      %s26 = int_to_ptr.hbm [resolvable:$true] %s25
      %s27 = sshll.u32 [#allocation5], 4
      %s28 = int_to_ptr.vmem [resolvable:$true] %s27
      %33 = dma.hbm_to_vmem [thread:$0]  %s26, 512, %s28, [#allocation6], 128, 128, 8
    $region9: #{tpu_custom_call.1} parent=1 // pred_fallthru
      _
    // Predicated region
    $region10: #{tpu_custom_call.1} parent=1 // pred_check
      _
    $region11: #{tpu_custom_call.1} parent=1 // pred_check_branch
      %35 = sbr.rel (0) target = $region13
    $region12: #{tpu_custom_call.1} parent=1 // pred_region
      %37 = dma.done [#allocation3], 16
    $region13: #{tpu_custom_call.1} parent=1 // pred_fallthru
      _
    // Predicated region
    $region14: #{tpu_custom_call.1} parent=1 // pred_check
      _
    $region15: #{tpu_custom_call.1} parent=1 // pred_check_branch
      %39 = sbr.rel (0) target = $region17
    $region16: #{tpu_custom_call.1} parent=1 // pred_region
      %41 = dma.done [#allocation6], 512
    $region17: #{tpu_custom_call.1} parent=1 // pred_fallthru
      _
    %v42 = vld [vmem:[#allocation2] sm:$0x1]
    %v43 = vld [vmem:[#allocation5] sm:$0xff]
    %v44 = vld [vmem:[#allocation5 + $0x8] sm:$0xff]
    %46 = vset.pattern.permute.xlu0 0
    %47 = vperm.xlu0 %46, %v43
    %v48 = vpop.permute.xlu0 %47
    %51 = vset.pattern.permute.xlu0 0
    %52 = vperm.xlu0 %51, %v44
    %v53 = vpop.permute.xlu0 %52
    %v56 = vperm.slane %v42, 0
    %v58 = vmul.f32 %v48, %v56
    %v59 = vmul.f32 %v53, %v56
    %60 = vset.pattern.permute.xlu0 15
    %61 = vperm.xlu0 %60, %v43
    %v62 = vpop.permute.xlu0 %61
    %64 = vset.pattern.permute.xlu0 15
    %65 = vperm.xlu0 %64, %v44
    %v66 = vpop.permute.xlu0 %65
    %v68 = vadd.f32 %v58, %v62
    %v69 = vadd.f32 %v59, %v66
    %v70 = vtanh.pop %v68
    %v71 = vtanh.pop %v69
    %s72 = scalar_lea.vmem [#allocation5], 16
    %v73 = vld [vmem:[%s72] sm:$0xff]
    %75 = vset.pattern.permute.xlu0 0
    %76 = vperm.xlu0 %75, %v73
    %v77 = vpop.permute.xlu0 %76
    %v79 = vmul.f32 %v77, %v70
    %80 = vset.pattern.permute.xlu0 1
    %81 = vperm.xlu0 %80, %v73
    %v82 = vpop.permute.xlu0 %81
    %v85 = vrot.slane %v70, 1
    %v87 = vmul.f32 %v82, %v85
    %v88 = vadd.f32 %v79, %v87
    %89 = vset.pattern.permute.xlu0 2
    %90 = vperm.xlu0 %89, %v73
    %v91 = vpop.permute.xlu0 %90
    %v93 = vrot.slane %v70, 2
    %v95 = vmul.f32 %v91, %v93
    %v96 = vadd.f32 %v88, %v95
    %97 = vset.pattern.permute.xlu0 3
    %98 = vperm.xlu0 %97, %v73
    %v99 = vpop.permute.xlu0 %98
    %v101 = vrot.slane %v70, 3
    %v103 = vmul.f32 %v99, %v101
    %v104 = vadd.f32 %v96, %v103
    %105 = vset.pattern.permute.xlu0 4
    %106 = vperm.xlu0 %105, %v73
    %v107 = vpop.permute.xlu0 %106
    %v109 = vrot.slane %v70, 4
    %v111 = vmul.f32 %v107, %v109
    %v112 = vadd.f32 %v104, %v111
    %113 = vset.pattern.permute.xlu0 5
    %114 = vperm.xlu0 %113, %v73
    %v115 = vpop.permute.xlu0 %114
    %v117 = vrot.slane %v70, 5
    %v119 = vmul.f32 %v115, %v117
    %v120 = vadd.f32 %v112, %v119
    %121 = vset.pattern.permute.xlu0 6
    %122 = vperm.xlu0 %121, %v73
    %v123 = vpop.permute.xlu0 %122
    %v125 = vrot.slane %v70, 6
    %v127 = vmul.f32 %v123, %v125
    %v128 = vadd.f32 %v120, %v127
    %129 = vset.pattern.permute.xlu0 7
    %130 = vperm.xlu0 %129, %v73
    %v131 = vpop.permute.xlu0 %130
    %v133 = vrot.slane %v70, 7
    %v135 = vmul.f32 %v131, %v133
    %v136 = vadd.f32 %v128, %v135
    %137 = vset.pattern.permute.xlu0 8
    %138 = vperm.xlu0 %137, %v73
    %v139 = vpop.permute.xlu0 %138
    %v141 = vmul.f32 %v139, %v71
    %v142 = vadd.f32 %v136, %v141
    %143 = vset.pattern.permute.xlu0 9
    %144 = vperm.xlu0 %143, %v73
    %v145 = vpop.permute.xlu0 %144
    %v148 = vrot.slane %v71, 1
    %v150 = vmul.f32 %v145, %v148
    %v151 = vadd.f32 %v142, %v150
    %152 = vset.pattern.permute.xlu0 15
    %153 = vperm.xlu0 %152, %v73
    %v154 = vpop.permute.xlu0 %153
    %v156 = vadd.f32 %v151, %v154
    %157 = vst [vmem:[#allocation7] sm:$0x1] %v156
    // Predicated region
    $region18: #{tpu_custom_call.1} parent=1 // pred_check
      _
    $region19: #{tpu_custom_call.1} parent=1 // pred_check_branch
      %159 = sbr.rel (0) target = $region21
    $region20: #{tpu_custom_call.1} parent=1 // pred_region
      %161 = vsyncadd [#allocation4], 0
      %s163 = sshll.u32 [#allocation7], 4
      %s164 = int_to_ptr.vmem [resolvable:$true] %s163
      %s165 = sshll.u32 %s2, 4
      %s166 = int_to_ptr.hbm [resolvable:$true] %s165
      %168 = dma.vmem_to_hbm [thread:$0]  %s164, 16, %s166, [#allocation4]
    $region21: #{tpu_custom_call.1} parent=1 // pred_fallthru
      _
    // Predicated region
    $region22: #{tpu_custom_call.1} parent=1 // pred_check
      _
    $region23: #{tpu_custom_call.1} parent=1 // pred_check_branch
      %170 = sbr.rel (0) target = $region25
    $region24: #{tpu_custom_call.1} parent=1 // pred_region
      %172 = dma.done [#allocation4], 16
    $region25: #{tpu_custom_call.1} parent=1 // pred_fallthru
      _
    %173 = vsyncpa [#allocation3], 1
    %174 = vsyncpa [#allocation6], 1
    %175 = vsyncpa [#allocation4], 1

</llo_original>
